<compile_context>
chip_gen: v6e
topology: v6e:2x2x1
jax: 0.10.0
libtpu: 0.0.40
codegen_flags: <defaults>
</compile_context>

<pallas_src>
import functools

import jax
import jax.numpy as jnp
from jax.experimental import pallas as pl
from jax.experimental.pallas import tpu as pltpu


def _round_up(x, m):
    return (x + m - 1) // m * m


def _conv_bn_silu_kernel(x_ref, w_ref, shift_ref, o_ref, *,
                         k_h, k_w, stride, dilation, tho, wo, cin, apply_act):
    # x_ref:     (strip_h, Wp, Cin)      f32 input row strip (halo included)
    # w_ref:     (KH*KW*Cin, Cout_pad)   bf16, BN scale folded in
    # shift_ref: (1, Cout_pad)           f32 folded BN shift
    # o_ref:     (THO*Wo, Cout_pad)      f32, lane-dense output slab
    xs = x_ref[...]
    span_h = (tho - 1) * stride + 1
    span_w = (wo - 1) * stride + 1
    cols = []
    for ih in range(k_h):                    # static unroll over the K*K taps
        h0 = ih * dilation
        for iw in range(k_w):
            w0 = iw * dilation
            tap = xs[h0:h0 + span_h:stride, w0:w0 + span_w:stride, :]
            cols.append(tap.reshape(tho * wo, cin))
    # im2col patch -> one MXU matmul (bf16 operands, f32 accumulation).
    patches = jnp.concatenate(cols, axis=-1).astype(jnp.bfloat16)
    y = jnp.dot(patches, w_ref[...], preferred_element_type=jnp.float32)
    y = y + shift_ref[...]                   # folded BN shift
    if apply_act:
        y = y / (1.0 + jnp.exp(-y))          # SiLU (Conv.default_act)
    o_ref[...] = y.astype(o_ref.dtype)


def conv_forward(x_nchw, weight, gamma, beta, running_mean, running_var, *,
                 stride=1, padding=None, dilation=1, groups=1, act=True,
                 eps=1e-5):
    """Fused Conv2d(bias=False) + BatchNorm2d(eval) + SiLU.  NCHW in / NCHW out."""
    if groups != 1:
        # TODO(synk): grouped convolution (g > 1) not implemented in the kernel.
        raise NotImplementedError("groups != 1 not supported")
    # TODO(synk): arbitrary nn.Module activations are not supported; act=True
    # maps to SiLU (the module default), act=False to identity.

    n, cin, h, w = x_nchw.shape
    cout, _, k_h, k_w = weight.shape

    # autopad (same as the PyTorch helper for int k / p / d)
    keff_h = dilation * (k_h - 1) + 1
    keff_w = dilation * (k_w - 1) + 1
    pad_h = keff_h // 2 if padding is None else padding
    pad_w = keff_w // 2 if padding is None else padding

    ho = (h + 2 * pad_h - keff_h) // stride + 1
    wo = (w + 2 * pad_w - keff_w) // stride + 1

    # Row tiling: ~128 output rows per block keeps the f32 accumulator small
    # and yields multiple grid steps per image (pipelining / dual-TC work).
    tho = max(1, min(ho, max(1, 128 // wo)))
    n_tiles = -(-ho // tho)
    strip_h = (tho - 1) * stride + keff_h

    # --- layout plumbing in plain JAX: NCHW -> NHWC, pad, gather row strips ---
    x_nhwc = jnp.transpose(x_nchw, (0, 2, 3, 1)).astype(jnp.float32)
    hp_needed = (n_tiles - 1) * tho * stride + strip_h
    extra_h = max(0, hp_needed - (h + 2 * pad_h))
    x_pad = jnp.pad(x_nhwc, ((0, 0), (pad_h, pad_h + extra_h),
                             (pad_w, pad_w), (0, 0)))
    wp = x_pad.shape[2]
    x_strips = jnp.stack(
        [x_pad[:, t * tho * stride: t * tho * stride + strip_h]
         for t in range(n_tiles)], axis=1)        # (N, T, strip_h, Wp, Cin)

    # --- fold BN (eval) into weights; pad Cout to a lane-dense multiple of 128 ---
    scale = gamma / jnp.sqrt(running_var + eps)                  # (Cout,)
    shift = beta - running_mean * scale
    w_hwio = jnp.transpose(weight, (2, 3, 1, 0)) * scale         # (KH,KW,Cin,Cout)
    kk_cin = k_h * k_w * cin
    cout_pad = _round_up(cout, 128)
    w_mat = jnp.pad(w_hwio.reshape(kk_cin, cout),
                    ((0, 0), (0, cout_pad - cout))).astype(jnp.bfloat16)
    shift_p = jnp.pad(shift, (0, cout_pad - cout)
                      ).reshape(1, cout_pad).astype(jnp.float32)

    kernel = functools.partial(
        _conv_bn_silu_kernel, k_h=k_h, k_w=k_w, stride=stride,
        dilation=dilation, tho=tho, wo=wo, cin=cin, apply_act=bool(act))

    out = pl.pallas_call(
        kernel,
        out_shape=jax.ShapeDtypeStruct((n, n_tiles, tho * wo, cout_pad),
                                       jnp.float32),
        grid_spec=pltpu.PrefetchScalarGridSpec(
            num_scalar_prefetch=0,
            grid=(n, n_tiles),
            in_specs=[
                pl.BlockSpec((None, None, strip_h, wp, cin),
                             lambda b, t: (b, t, 0, 0, 0)),
                pl.BlockSpec((kk_cin, cout_pad), lambda b, t: (0, 0)),
                pl.BlockSpec((1, cout_pad), lambda b, t: (0, 0)),
            ],
            out_specs=pl.BlockSpec((None, None, tho * wo, cout_pad),
                                   lambda b, t: (b, t, 0, 0)),
        ),
        compiler_params=pltpu.CompilerParams(
            dimension_semantics=("parallel", "parallel"),
            vmem_limit_bytes=48 * 1024 * 1024),   # headroom below v7x's 64 MiB
    )(x_strips, w_mat, shift_p)

    # (N, T, THO*Wo, Cout_pad) -> (N, Ho, Wo, Cout) -> NCHW
    out = out.reshape(n, n_tiles * tho, wo, cout_pad)[:, :ho, :, :cout]
    return jnp.transpose(out, (0, 3, 1, 2))


def _reference(x, weight, gamma, beta, mean, var, *, stride, padding, dilation,
               act, eps=1e-5):
    k_h, k_w = weight.shape[2], weight.shape[3]
    pad_h = (dilation * (k_h - 1) + 1) // 2 if padding is None else padding
    pad_w = (dilation * (k_w - 1) + 1) // 2 if padding is None else padding
    y = jax.lax.conv_general_dilated(
        x, weight, window_strides=(stride, stride),
        padding=((pad_h, pad_h), (pad_w, pad_w)),
        rhs_dilation=(dilation, dilation),
        dimension_numbers=("NCHW", "OIHW", "NCHW"))
    scale = (gamma / jnp.sqrt(var + eps)).reshape(1, -1, 1, 1)
    shift = (beta - mean * gamma / jnp.sqrt(var + eps)).reshape(1, -1, 1, 1)
    y = y * scale + shift
    if act:
        y = y * jax.nn.sigmoid(y)           # SiLU
    return y


if __name__ == "__main__":
    # Conv(c1=4, c2=8, k=3, s=1) -> autopad p=1, BN (eval stats), SiLU
    N, Cin, H, W = 2, 4, 16, 16
    Cout, K = 8, 3

    key = jax.random.PRNGKey(0)
    k_x, k_w, k_g, k_b, k_m, k_v = jax.random.split(key, 6)

    x = jax.random.normal(k_x, (N, Cin, H, W), dtype=jnp.float32)
    weight = jax.random.normal(k_w, (Cout, Cin, K, K), dtype=jnp.float32) * 0.1
    gamma = 1.0 + 0.1 * jax.random.normal(k_g, (Cout,), dtype=jnp.float32)
    beta = 0.1 * jax.random.normal(k_b, (Cout,), dtype=jnp.float32)
    running_mean = 0.05 * jax.random.normal(k_m, (Cout,), dtype=jnp.float32)
    running_var = (jnp.abs(jax.random.normal(k_v, (Cout,), dtype=jnp.float32))
                   * 0.1 + 1.0)

    out = conv_forward(x, weight, gamma, beta, running_mean, running_var,
                       stride=1, padding=None, dilation=1, act=True)
    out = jax.block_until_ready(out)

    ref = _reference(x, weight, gamma, beta, running_mean, running_var,
                     stride=1, padding=None, dilation=1, act=True)
    assert out.shape == (N, Cout, H, W), out.shape
    # bf16 MXU operands (f32 accumulation) -> looser tolerance than pure f32.
    assert jnp.allclose(out, ref, atol=5e-2, rtol=5e-2), (
        "mismatch vs reference, max abs err = "
        + str(float(jnp.max(jnp.abs(out - ref)))))

    print("KERNEL_OK")
</pallas_src>

<mosaic_0001>
module attributes {stable_mosaic.version = 11 : i64} {
  func.func @_conv_bn_silu_kernel(%arg0: i32, %arg1: i32, %arg2: memref<1x1x10x18x4xf32, #tpu.memory_space<vmem>>, %arg3: memref<36x128xbf16, #tpu.memory_space<vmem>>, %arg4: memref<1x128xf32, #tpu.memory_space<vmem>>, %arg5: memref<1x1x128x128xf32, #tpu.memory_space<vmem>>) attributes {dimension_semantics = [#tpu.dimension_semantics<parallel>, #tpu.dimension_semantics<parallel>], iteration_bounds = array<i64: 2, 2>, scalar_prefetch = 0 : i64, scratch_operands = 0 : i64, tpu.core_type = #tpu.core_type<tc>, window_params = [{transform_indices = @transform_0, window_bounds = array<i64: 1, 1, 10, 18, 4>}, {pipeline_mode = #tpu.pipeline_mode<synchronous>, transform_indices = @transform_1, window_bounds = array<i64: 36, 128>}, {pipeline_mode = #tpu.pipeline_mode<synchronous>, transform_indices = @transform_2, window_bounds = array<i64: 1, 128>}, {transform_indices = @transform_3, window_bounds = array<i64: 1, 1, 128, 128>}]} {
    %c0 = arith.constant 0 : index
    %c0_0 = arith.constant 0 : index
    %c0_1 = arith.constant 0 : index
    %c0_2 = arith.constant 0 : index
    %c0_3 = arith.constant 0 : index
    %0 = vector.load %arg2[%c0, %c0_0, %c0_1, %c0_2, %c0_3] : memref<1x1x10x18x4xf32, #tpu.memory_space<vmem>>, vector<1x1x10x18x4xf32>
    %1 = vector.shape_cast %0 : vector<1x1x10x18x4xf32> to vector<10x18x4xf32>
    %2 = vector.extract_strided_slice %1 {offsets = [0, 0, 0], sizes = [8, 16, 4], strides = [1, 1, 1]} : vector<10x18x4xf32> to vector<8x16x4xf32>
    %3 = vector.shape_cast %2 : vector<8x16x4xf32> to vector<128x4xf32>
    %4 = vector.extract_strided_slice %1 {offsets = [0, 1, 0], sizes = [8, 16, 4], strides = [1, 1, 1]} : vector<10x18x4xf32> to vector<8x16x4xf32>
    %5 = vector.shape_cast %4 : vector<8x16x4xf32> to vector<128x4xf32>
    %6 = vector.extract_strided_slice %1 {offsets = [0, 2, 0], sizes = [8, 16, 4], strides = [1, 1, 1]} : vector<10x18x4xf32> to vector<8x16x4xf32>
    %7 = vector.shape_cast %6 : vector<8x16x4xf32> to vector<128x4xf32>
    %8 = vector.extract_strided_slice %1 {offsets = [1, 0, 0], sizes = [8, 16, 4], strides = [1, 1, 1]} : vector<10x18x4xf32> to vector<8x16x4xf32>
    %9 = vector.shape_cast %8 : vector<8x16x4xf32> to vector<128x4xf32>
    %10 = vector.extract_strided_slice %1 {offsets = [1, 1, 0], sizes = [8, 16, 4], strides = [1, 1, 1]} : vector<10x18x4xf32> to vector<8x16x4xf32>
    %11 = vector.shape_cast %10 : vector<8x16x4xf32> to vector<128x4xf32>
    %12 = vector.extract_strided_slice %1 {offsets = [1, 2, 0], sizes = [8, 16, 4], strides = [1, 1, 1]} : vector<10x18x4xf32> to vector<8x16x4xf32>
    %13 = vector.shape_cast %12 : vector<8x16x4xf32> to vector<128x4xf32>
    %14 = vector.extract_strided_slice %1 {offsets = [2, 0, 0], sizes = [8, 16, 4], strides = [1, 1, 1]} : vector<10x18x4xf32> to vector<8x16x4xf32>
    %15 = vector.shape_cast %14 : vector<8x16x4xf32> to vector<128x4xf32>
    %16 = vector.extract_strided_slice %1 {offsets = [2, 1, 0], sizes = [8, 16, 4], strides = [1, 1, 1]} : vector<10x18x4xf32> to vector<8x16x4xf32>
    %17 = vector.shape_cast %16 : vector<8x16x4xf32> to vector<128x4xf32>
    %18 = vector.extract_strided_slice %1 {offsets = [2, 2, 0], sizes = [8, 16, 4], strides = [1, 1, 1]} : vector<10x18x4xf32> to vector<8x16x4xf32>
    %19 = vector.shape_cast %18 : vector<8x16x4xf32> to vector<128x4xf32>
    %20 = tpu.concatenate %3, %5, %7, %9, %11, %13, %15, %17, %19 in 1 : vector<128x4xf32>, vector<128x4xf32>, vector<128x4xf32>, vector<128x4xf32>, vector<128x4xf32>, vector<128x4xf32>, vector<128x4xf32>, vector<128x4xf32>, vector<128x4xf32> -> vector<128x36xf32>
    %21 = arith.truncf %20 : vector<128x36xf32> to vector<128x36xbf16>
    %c0_4 = arith.constant 0 : index
    %c0_5 = arith.constant 0 : index
    %22 = vector.load %arg3[%c0_4, %c0_5] : memref<36x128xbf16, #tpu.memory_space<vmem>>, vector<36x128xbf16>
    %cst = arith.constant dense<0.000000e+00> : vector<128x128xf32>
    %23 = tpu.matmul %21, %22, %cst {dimension_numbers = #tpu.dot_dimension_numbers<[1], [0], [0], [1], [0, 0, 1, 1], [], []>} : vector<128x36xbf16>, vector<36x128xbf16>, vector<128x128xf32> -> vector<128x128xf32>
    %c0_6 = arith.constant 0 : index
    %c0_7 = arith.constant 0 : index
    %24 = vector.load %arg4[%c0_6, %c0_7] : memref<1x128xf32, #tpu.memory_space<vmem>>, vector<1x128xf32>
    %25 = vector.broadcast %24 : vector<1x128xf32> to vector<128x128xf32>
    %26 = arith.addf %23, %25 : vector<128x128xf32>
    %cst_8 = arith.constant 0.000000e+00 : f32
    %27 = vector.broadcast %cst_8 : f32 to vector<128x128xf32>
    %28 = arith.subf %27, %26 : vector<128x128xf32>
    %29 = math.exp %28 : vector<128x128xf32>
    %cst_9 = arith.constant 1.000000e+00 : f32
    %30 = vector.broadcast %cst_9 : f32 to vector<128x128xf32>
    %31 = arith.addf %30, %29 : vector<128x128xf32>
    %32 = arith.divf %26, %31 : vector<128x128xf32>
    %c0_10 = arith.constant 0 : index
    %c0_11 = arith.constant 0 : index
    %c0_12 = arith.constant 0 : index
    %c0_13 = arith.constant 0 : index
    %33 = vector.load %arg5[%c0_10, %c0_11, %c0_12, %c0_13] : memref<1x1x128x128xf32, #tpu.memory_space<vmem>>, vector<1x1x128x128xf32>
    %34 = vector.shape_cast %33 : vector<1x1x128x128xf32> to vector<128x128xf32>
    %35 = vector.shape_cast %32 : vector<128x128xf32> to vector<1x1x128x128xf32>
    tpu.vector_store %arg5[%c0_10, %c0_11, %c0_12, %c0_13], %35 {strides = array<i32>} : memref<1x1x128x128xf32, #tpu.memory_space<vmem>>, vector<1x1x128x128xf32>,
    return
  }
  func.func @transform_0(%arg0: i32, %arg1: i32) -> (i32, i32, i32, i32, i32) {
    %c0_i32 = arith.constant 0 : i32
    %c0_i32_0 = arith.constant 0 : i32
    %c0_i32_1 = arith.constant 0 : i32
    %c0_i32_2 = arith.constant 0 : i32
    return %arg0, %arg1, %c0_i32, %c0_i32_0, %c0_i32_1 : i32, i32, i32, i32, i32
  }
  func.func @transform_1(%arg0: i32, %arg1: i32) -> (i32, i32) {
    %c0_i32 = arith.constant 0 : i32
    %c0_i32_0 = arith.constant 0 : i32
    %c0_i32_1 = arith.constant 0 : i32
    return %c0_i32, %c0_i32_0 : i32, i32
  }
  func.func @transform_2(%arg0: i32, %arg1: i32) -> (i32, i32) {
    %c0_i32 = arith.constant 0 : i32
    %c0_i32_0 = arith.constant 0 : i32
    %c0_i32_1 = arith.constant 0 : i32
    return %c0_i32, %c0_i32_0 : i32, i32
  }
  func.func @transform_3(%arg0: i32, %arg1: i32) -> (i32, i32, i32, i32) {
    %c0_i32 = arith.constant 0 : i32
    %c0_i32_0 = arith.constant 0 : i32
    %c0_i32_1 = arith.constant 0 : i32
    return %arg0, %arg1, %c0_i32, %c0_i32_0 : i32, i32, i32, i32
  }
}

</mosaic_0001>

<llo_original>
// kernel: tpu_custom_call.1
$region0: #{tpu_custom_call.1}
  #allocation0 [shape = 'u32[]', space=smem, size = 0x4, offset = 0x4, fixed_abs, tag = 'smem constant byte address 0x4 - core index']
  #allocation1 [shape = 'u32[144,128]{1,0:T(1,128)}', space=vmem, size = 0x12000, scoped, tag = 'internal scratch']
  %s0 = inlined_call_operand.vmem [shape: f32[2,2,10,18,4], index: 0, kind: input, shape index: {}]
  %s1 = inlined_call_operand.vmem [shape: bf16[36,128], index: 1, kind: input, shape index: {}]
  %s2 = inlined_call_operand.vmem [shape: f32[1,128], index: 2, kind: input, shape index: {}]
  %s3 = inlined_call_operand.hbm [shape: f32[2,2,128,128], index: 3, kind: output, shape index: {}]
  %s4 = sld [smem:[#allocation0]]
  $region45: #{tpu_custom_call.1} parent=0
    _
  %s6 = ssub.s32 1, %s4
  %s7 = scalar_select 0, %s6, %s4
  $region1: #{tpu_custom_call.1} parent=0
    #allocation2 [shape = 'u8[131072]{0}', space=vmem, size = 0x20000, scoped, tag = 'output window, operand 0']
    #allocation3 [shape = 's32[2]{0}', space=sflag, size = 0x8, scoped, tag = 'scoped memory for tpu_custom_call.1']
    %8 = vsyncpa [#allocation3], 0
    %s9 = scalar_lea.sflag [#allocation3], 1
    %10 = vsyncpa %s9, 0
    loop: start=0, step=1, limit=6
    $region2: #{tpu_custom_call.1} parent=1 // loop_pre_header
      _
    $region3: #{tpu_custom_call.1} parent=1 // loop_header
      %s12 = sphi 0, %s16
      %p13 = scmp.ge.s32.totalorder %s12, 6
      %s19 = sphi 0, %s31
      %s20 = sphi 0, %s27
      %s21 = sphi 0, %s19
      %s22 = sphi 0, %s20
      %s23 = sphi 0, %s21
      %s24 = sphi 0, %s22
      %s36 = sphi 0, %s38
      %s39 = sphi 0, %s36
      %s40 = sphi 0, %s39
      %s56 = sphi 0, %s40
      %s60 = sphi 0, %s60
      %s62 = sphi 0, %s60
      %s63 = sphi 0, %s62
      %s77 = sphi 0, %s63
      %s81 = sphi 0, %s81
      %s83 = sphi 0, %s81
      %s84 = sphi 0, %s83
      %s98 = sphi 0, %s84
      %s106 = sphi 0, %s108
      %s109 = sphi 0, %s106
      %s110 = sphi 0, %s109
      %s126 = sphi 0, %s110
    $region4: #{tpu_custom_call.1} parent=1 // loop_header_branch
      %15 = sbr.rel (%p13) target = $region8
    $region5: #{tpu_custom_call.1} parent=1 // loop_body
      %s17 = ssub.s32 %s12, 1
      %s18 = ssub.s32 %s12, 2
      %s25 = sadd.s32 1, %s20
      %p26 = scmp.ge.s32.totalorder %s25, 2
      %s27 = scalar_select %p26, 0, %s25
      %s28 = sadd.s32 1, %s19
      %s29 = scalar_select %p26, %s28, %s19
      %p30 = scmp.ge.s32.totalorder %s29, 2
      %s31 = scalar_select %p30, 0, %s29
      %s32 = ssub.s32 %s19, %s31
      %s33 = ssub.s32 %s20, %s27
      %s34 = sor.u32 %s32, %s33
      %p35 = scmp.eq.s32.totalorder %s34, 0
      %s37 = sadd.s32 %s36, 1
      %s38 = scalar_select %p35, %s36, %s37
      %p41 = pneg %p35
      %p42 = scmp.eq.s32.totalorder %s12, 3
      %p43 = por %p41, %p42
      %p44 = scmp.ne.s32.totalorder %s36, %s39
      %p45 = scmp.eq.s32.totalorder %s12, 0
      %p46 = por %p44, %p45
      %p47 = scmp.ne.s32.totalorder %s36, %s39
      %p48 = scmp.eq.s32.totalorder %s17, 3
      %p49 = por %p47, %p48
      %p50 = scmp.ne.s32.totalorder %s39, %s40
      %p51 = scmp.eq.s32.totalorder %s17, 0
      %p52 = por %p50, %p51
      %p53 = scmp.ne.s32.totalorder %s39, %s40
      %p54 = scmp.eq.s32.totalorder %s18, 3
      %p55 = por %p53, %p54
      %p57 = scmp.ne.s32.totalorder %s40, %s56
      %p58 = scmp.eq.s32.totalorder %s18, 0
      %p59 = por %p57, %p58
      %s61 = sadd.s32 %s60, 1
      %p64 = scmp.eq.s32.totalorder %s12, 3
      %p65 = scmp.ne.s32.totalorder %s60, %s62
      %p66 = scmp.eq.s32.totalorder %s12, 0
      %p67 = por %p65, %p66
      %p68 = scmp.ne.s32.totalorder %s60, %s62
      %p69 = scmp.eq.s32.totalorder %s17, 3
      %p70 = por %p68, %p69
      %p71 = scmp.ne.s32.totalorder %s62, %s63
      %p72 = scmp.eq.s32.totalorder %s17, 0
      %p73 = por %p71, %p72
      %p74 = scmp.ne.s32.totalorder %s62, %s63
      %p75 = scmp.eq.s32.totalorder %s18, 3
      %p76 = por %p74, %p75
      %p78 = scmp.ne.s32.totalorder %s63, %s77
      %p79 = scmp.eq.s32.totalorder %s18, 0
      %p80 = por %p78, %p79
      %s82 = sadd.s32 %s81, 1
      %p85 = scmp.eq.s32.totalorder %s12, 3
      %p86 = scmp.ne.s32.totalorder %s81, %s83
      %p87 = scmp.eq.s32.totalorder %s12, 0
      %p88 = por %p86, %p87
      %p89 = scmp.ne.s32.totalorder %s81, %s83
      %p90 = scmp.eq.s32.totalorder %s17, 3
      %p91 = por %p89, %p90
      %p92 = scmp.ne.s32.totalorder %s83, %s84
      %p93 = scmp.eq.s32.totalorder %s17, 0
      %p94 = por %p92, %p93
      %p95 = scmp.ne.s32.totalorder %s83, %s84
      %p96 = scmp.eq.s32.totalorder %s18, 3
      %p97 = por %p95, %p96
      %p99 = scmp.ne.s32.totalorder %s84, %s98
      %p100 = scmp.eq.s32.totalorder %s18, 0
      %p101 = por %p99, %p100
      %s102 = ssub.s32 %s19, %s31
      %s103 = ssub.s32 %s20, %s27
      %s104 = sor.u32 %s102, %s103
      %p105 = scmp.eq.s32.totalorder %s104, 0
      %s107 = sadd.s32 %s106, 1
      %s108 = scalar_select %p105, %s106, %s107
      %p111 = pneg %p105
      %p112 = scmp.eq.s32.totalorder %s12, 3
      %p113 = por %p111, %p112
      %p114 = scmp.ne.s32.totalorder %s106, %s109
      %p115 = scmp.eq.s32.totalorder %s12, 0
      %p116 = por %p114, %p115
      %p117 = scmp.ne.s32.totalorder %s106, %s109
      %p118 = scmp.eq.s32.totalorder %s17, 3
      %p119 = por %p117, %p118
      %p120 = scmp.ne.s32.totalorder %s109, %s110
      %p121 = scmp.eq.s32.totalorder %s17, 0
      %p122 = por %p120, %p121
      %p123 = scmp.ne.s32.totalorder %s109, %s110
      %p124 = scmp.eq.s32.totalorder %s18, 3
      %p125 = por %p123, %p124
      %p127 = scmp.ne.s32.totalorder %s110, %s126
      %p128 = scmp.eq.s32.totalorder %s18, 0
      %p129 = por %p127, %p128
      %p130 = scmp.le.s32.totalorder 1, %s12
      %p131 = scmp.lt.s32.totalorder %s12, 5
      %p132 = pnand %p130, %p131
      %p133 = pneg %p132
      // Predicated region
      $region9: #{tpu_custom_call.1} parent=5 // pred_check
        _
      $region10: #{tpu_custom_call.1} parent=5 // pred_check_branch
        %135 = sbr.rel (%p132) target = $region12
      $region11: #{tpu_custom_call.1} parent=5 // pred_region
        %s136 = ssub.s32 %s12, 1
        // Predicated region
        $region13: #{tpu_custom_call.1} parent=11 // pred_check
          %p137 = pneg %p73
        $region14: #{tpu_custom_call.1} parent=11 // pred_check_branch
          %139 = sbr.rel (%p137) target = $region16
        $region15: #{tpu_custom_call.1} parent=11 // pred_region
          _
        $region16: #{tpu_custom_call.1} parent=11 // pred_fallthru
          _
        // Predicated region
        $region17: #{tpu_custom_call.1} parent=11 // pred_check
          %p140 = pneg %p94
        $region18: #{tpu_custom_call.1} parent=11 // pred_check_branch
          %142 = sbr.rel (%p140) target = $region20
        $region19: #{tpu_custom_call.1} parent=11 // pred_region
          _
        $region20: #{tpu_custom_call.1} parent=11 // pred_fallthru
          _
      $region12: #{tpu_custom_call.1} parent=5 // pred_fallthru
        _
      %p143 = scmp.lt.s32.totalorder %s12, 4
      // Predicated region
      $region21: #{tpu_custom_call.1} parent=5 // pred_check
        %p144 = pneg %p143
      $region22: #{tpu_custom_call.1} parent=5 // pred_check_branch
        %146 = sbr.rel (%p144) target = $region24
      $region23: #{tpu_custom_call.1} parent=5 // pred_region
        // Predicated region
        $region25: #{tpu_custom_call.1} parent=23 // pred_check
          %p147 = pneg %p46
        $region26: #{tpu_custom_call.1} parent=23 // pred_check_branch
          %149 = sbr.rel (%p147) target = $region28
        $region27: #{tpu_custom_call.1} parent=23 // pred_region
          %p150 = scmp.lt.s32.totalorder %s19, 1
          %s151 = scalar_select %p150, %s19, 1
          %p152 = scmp.lt.s32.totalorder %s20, 1
          %s153 = scalar_select %p152, %s20, 1
          %s154 = smul.addr %s153, 30
          %s155 = smul.addr %s151, 60
          %s156 = sadd.s32 %s154, %s155
          %s157 = smul.addr %s156, 8
          %s158 = scalar_lea.vmem %s0, %s157
        $region28: #{tpu_custom_call.1} parent=23 // pred_fallthru
          _
      $region24: #{tpu_custom_call.1} parent=5 // pred_fallthru
        _
      %p159 = scmp.le.s32.totalorder 1, %s12
      %p160 = scmp.lt.s32.totalorder %s12, 5
      %p161 = pnand %p159, %p160
      %p162 = pneg %p161
      // Predicated region
      $region29: #{tpu_custom_call.1} parent=5 // pred_check
        _
      $region30: #{tpu_custom_call.1} parent=5 // pred_check_branch
        %164 = sbr.rel (%p161) target = $region32
      $region31: #{tpu_custom_call.1} parent=5 // pred_region
        %s165 = ssub.s32 %s12, 1
        %p166 = scmp.lt.s32.totalorder %s21, 1
        %s167 = scalar_select %p166, %s21, 1
        %p168 = scmp.lt.s32.totalorder %s22, 1
        %s169 = scalar_select %p168, %s22, 1
        %s170 = smul.addr %s169, 30
        %s171 = smul.addr %s167, 60
        %s172 = sadd.s32 %s170, %s171
        %s173 = smul.addr %s172, 8
        %s174 = scalar_lea.vmem %s0, %s173
        %p175 = pneg %p52
        %p176 = pneg %p49
        %p177 = pneg %p73
        %p178 = pneg %p70
        %p179 = pneg %p94
        %p180 = pneg %p91
        %p181 = pneg %p122
        %p182 = pneg %p119
        %s183 = sand.u32 %s109, 1
        %s184 = scalar_lea.sflag [#allocation3], %s183
        %s185 = sand.u32 %s109, 1
        %s186 = smul.addr %s185, 128
        %s187 = scalar_lea.vmem [#allocation2], %s186
        %p188 = scmp.lt.s32.totalorder %s21, 1
        %s189 = scalar_select %p188, %s21, 1
        %p190 = scmp.lt.s32.totalorder %s22, 1
        %s191 = scalar_select %p190, %s22, 1
        %s192 = smul.addr %s191, 30
        %s193 = smul.addr %s189, 60
        %s194 = sadd.s32 %s192, %s193
        %s195 = smul.addr %s194, 8
        %s196 = scalar_lea.vmem %s0, %s195
        %v198 = vld [vmem:[%s196] sm:$0xff]
        %v199 = vld [vmem:[%s196 + $0x8] sm:$0xff]
        %v200 = vld [vmem:[%s196 + $0x10] sm:$0x3]
        %v201 = vld [vmem:[%s196 + $0x18] sm:$0xff]
        %v202 = vld [vmem:[%s196 + $0x20] sm:$0xff]
        %v203 = vld [vmem:[%s196 + $0x28] sm:$0x3]
        %v204 = vld [vmem:[%s196 + $0x30] sm:$0xff]
        %v205 = vld [vmem:[%s196 + $0x38] sm:$0xff]
        %v206 = vld [vmem:[%s196 + $0x40] sm:$0x3]
        %v207 = vld [vmem:[%s196 + $0x48] sm:$0xff]
        %v208 = vld [vmem:[%s196 + $0x50] sm:$0xff]
        %v209 = vld [vmem:[%s196 + $0x58] sm:$0x3]
        %v210 = vld [vmem:[%s196 + $0x60] sm:$0xff]
        %v211 = vld [vmem:[%s196 + $0x68] sm:$0xff]
        %v212 = vld [vmem:[%s196 + $0x70] sm:$0x3]
        %v213 = vld [vmem:[%s196 + $0x78] sm:$0xff]
        %v214 = vld [vmem:[%s196 + $0x80] sm:$0xff]
        %v215 = vld [vmem:[%s196 + $0x88] sm:$0x3]
        %v216 = vld [vmem:[%s196 + $0x90] sm:$0xff]
        %v217 = vld [vmem:[%s196 + $0x98] sm:$0xff]
        %v218 = vld [vmem:[%s196 + $0xa0] sm:$0x3]
        %v219 = vld [vmem:[%s196 + $0xa8] sm:$0xff]
        %v220 = vld [vmem:[%s196 + $0xb0] sm:$0xff]
        %v221 = vld [vmem:[%s196 + $0xb8] sm:$0x3]
        %v222 = vld [vmem:[%s196 + $0xc0] sm:$0xff]
        %v223 = vld [vmem:[%s196 + $0xc8] sm:$0xff]
        %v224 = vld [vmem:[%s196 + $0xd0] sm:$0x3]
        %v225 = vld [vmem:[%s196 + $0xd8] sm:$0xff]
        %v226 = vld [vmem:[%s196 + $0xe0] sm:$0xff]
        %v227 = vld [vmem:[%s196 + $0xe8] sm:$0x3]
        %vm252 = vcmask 1046528
        %v253 = vrot.slane %v198, 1
        %v254 = vrot.slane %v199, 1
        %v255 = vsel %vm252, %v253, %v254
        %v256 = vrot.slane %v200, 1
        %v257 = vsel %vm252, %v254, %v256
        %v258 = vrot.slane %v201, 1
        %v259 = vrot.slane %v202, 1
        %v260 = vsel %vm252, %v258, %v259
        %v261 = vrot.slane %v203, 1
        %v262 = vsel %vm252, %v259, %v261
        %v263 = vrot.slane %v204, 1
        %v264 = vrot.slane %v205, 1
        %v265 = vsel %vm252, %v263, %v264
        %v266 = vrot.slane %v206, 1
        %v267 = vsel %vm252, %v264, %v266
        %v268 = vrot.slane %v207, 1
        %v269 = vrot.slane %v208, 1
        %v270 = vsel %vm252, %v268, %v269
        %v271 = vrot.slane %v209, 1
        %v272 = vsel %vm252, %v269, %v271
        %v273 = vrot.slane %v210, 1
        %v274 = vrot.slane %v211, 1
        %v275 = vsel %vm252, %v273, %v274
        %v276 = vrot.slane %v212, 1
        %v277 = vsel %vm252, %v274, %v276
        %v278 = vrot.slane %v213, 1
        %v279 = vrot.slane %v214, 1
        %v280 = vsel %vm252, %v278, %v279
        %v281 = vrot.slane %v215, 1
        %v282 = vsel %vm252, %v279, %v281
        %v283 = vrot.slane %v216, 1
        %v284 = vrot.slane %v217, 1
        %v285 = vsel %vm252, %v283, %v284
        %v286 = vrot.slane %v218, 1
        %v287 = vsel %vm252, %v284, %v286
        %v288 = vrot.slane %v219, 1
        %v289 = vrot.slane %v220, 1
        %v290 = vsel %vm252, %v288, %v289
        %v291 = vrot.slane %v221, 1
        %v292 = vsel %vm252, %v289, %v291
        %vm293 = vcmask 1045504
        %v294 = vrot.slane %v198, 2
        %v295 = vrot.slane %v199, 2
        %v296 = vsel %vm293, %v294, %v295
        %v297 = vrot.slane %v200, 2
        %v298 = vsel %vm293, %v295, %v297
        %v299 = vrot.slane %v201, 2
        %v300 = vrot.slane %v202, 2
        %v301 = vsel %vm293, %v299, %v300
        %v302 = vrot.slane %v203, 2
        %v303 = vsel %vm293, %v300, %v302
        %v304 = vrot.slane %v204, 2
        %v305 = vrot.slane %v205, 2
        %v306 = vsel %vm293, %v304, %v305
        %v307 = vrot.slane %v206, 2
        %v308 = vsel %vm293, %v305, %v307
        %v309 = vrot.slane %v207, 2
        %v310 = vrot.slane %v208, 2
        %v311 = vsel %vm293, %v309, %v310
        %v312 = vrot.slane %v209, 2
        %v313 = vsel %vm293, %v310, %v312
        %v314 = vrot.slane %v210, 2
        %v315 = vrot.slane %v211, 2
        %v316 = vsel %vm293, %v314, %v315
        %v317 = vrot.slane %v212, 2
        %v318 = vsel %vm293, %v315, %v317
        %v319 = vrot.slane %v213, 2
        %v320 = vrot.slane %v214, 2
        %v321 = vsel %vm293, %v319, %v320
        %v322 = vrot.slane %v215, 2
        %v323 = vsel %vm293, %v320, %v322
        %v324 = vrot.slane %v216, 2
        %v325 = vrot.slane %v217, 2
        %v326 = vsel %vm293, %v324, %v325
        %v327 = vrot.slane %v218, 2
        %v328 = vsel %vm293, %v325, %v327
        %v329 = vrot.slane %v219, 2
        %v330 = vrot.slane %v220, 2
        %v331 = vsel %vm293, %v329, %v330
        %v332 = vrot.slane %v221, 2
        %v333 = vsel %vm293, %v330, %v332
        %v337 = vrot.slane %v222, 1
        %v338 = vrot.slane %v223, 1
        %v339 = vsel %vm252, %v337, %v338
        %v340 = vrot.slane %v224, 1
        %v341 = vsel %vm252, %v338, %v340
        %v342 = vrot.slane %v222, 2
        %v343 = vrot.slane %v223, 2
        %v344 = vsel %vm293, %v342, %v343
        %v345 = vrot.slane %v224, 2
        %v346 = vsel %vm293, %v343, %v345
        %v350 = vrot.slane %v225, 1
        %v351 = vrot.slane %v226, 1
        %v352 = vsel %vm252, %v350, %v351
        %v353 = vrot.slane %v227, 1
        %v354 = vsel %vm252, %v351, %v353
        %v355 = vrot.slane %v225, 2
        %v356 = vrot.slane %v226, 2
        %v357 = vsel %vm293, %v355, %v356
        %v358 = vrot.slane %v227, 2
        %v359 = vsel %vm293, %v356, %v358
        %360 = vrot.lane.b32.xlu0 %v255, 4
        %v361 = vpop.permute.xlu0 %360
        %362 = vrot.lane.b32.xlu0 %v257, 4
        %v363 = vpop.permute.xlu0 %362
        %364 = vrot.lane.b32.xlu0 %v260, 4
        %v365 = vpop.permute.xlu0 %364
        %366 = vrot.lane.b32.xlu0 %v262, 4
        %v367 = vpop.permute.xlu0 %366
        %368 = vrot.lane.b32.xlu0 %v265, 4
        %v369 = vpop.permute.xlu0 %368
        %370 = vrot.lane.b32.xlu0 %v267, 4
        %v371 = vpop.permute.xlu0 %370
        %372 = vrot.lane.b32.xlu0 %v270, 4
        %v373 = vpop.permute.xlu0 %372
        %374 = vrot.lane.b32.xlu0 %v272, 4
        %v375 = vpop.permute.xlu0 %374
        %376 = vrot.lane.b32.xlu0 %v275, 4
        %v377 = vpop.permute.xlu0 %376
        %378 = vrot.lane.b32.xlu0 %v277, 4
        %v379 = vpop.permute.xlu0 %378
        %380 = vrot.lane.b32.xlu0 %v280, 4
        %v381 = vpop.permute.xlu0 %380
        %382 = vrot.lane.b32.xlu0 %v282, 4
        %v383 = vpop.permute.xlu0 %382
        %384 = vrot.lane.b32.xlu0 %v285, 4
        %v385 = vpop.permute.xlu0 %384
        %386 = vrot.lane.b32.xlu0 %v287, 4
        %v387 = vpop.permute.xlu0 %386
        %388 = vrot.lane.b32.xlu0 %v290, 4
        %v389 = vpop.permute.xlu0 %388
        %390 = vrot.lane.b32.xlu0 %v292, 4
        %v391 = vpop.permute.xlu0 %390
        %408 = vrot.lane.b32.xlu0 %v296, 8
        %v409 = vpop.permute.xlu0 %408
        %410 = vrot.lane.b32.xlu0 %v298, 8
        %v411 = vpop.permute.xlu0 %410
        %412 = vrot.lane.b32.xlu0 %v301, 8
        %v413 = vpop.permute.xlu0 %412
        %414 = vrot.lane.b32.xlu0 %v303, 8
        %v415 = vpop.permute.xlu0 %414
        %416 = vrot.lane.b32.xlu0 %v306, 8
        %v417 = vpop.permute.xlu0 %416
        %418 = vrot.lane.b32.xlu0 %v308, 8
        %v419 = vpop.permute.xlu0 %418
        %420 = vrot.lane.b32.xlu0 %v311, 8
        %v421 = vpop.permute.xlu0 %420
        %422 = vrot.lane.b32.xlu0 %v313, 8
        %v423 = vpop.permute.xlu0 %422
        %424 = vrot.lane.b32.xlu0 %v316, 8
        %v425 = vpop.permute.xlu0 %424
        %426 = vrot.lane.b32.xlu0 %v318, 8
        %v427 = vpop.permute.xlu0 %426
        %428 = vrot.lane.b32.xlu0 %v321, 8
        %v429 = vpop.permute.xlu0 %428
        %430 = vrot.lane.b32.xlu0 %v323, 8
        %v431 = vpop.permute.xlu0 %430
        %432 = vrot.lane.b32.xlu0 %v326, 8
        %v433 = vpop.permute.xlu0 %432
        %434 = vrot.lane.b32.xlu0 %v328, 8
        %v435 = vpop.permute.xlu0 %434
        %436 = vrot.lane.b32.xlu0 %v331, 8
        %v437 = vpop.permute.xlu0 %436
        %438 = vrot.lane.b32.xlu0 %v333, 8
        %v439 = vpop.permute.xlu0 %438
        %456 = vrot.lane.b32.xlu0 %v201, 12
        %v457 = vpop.permute.xlu0 %456
        %458 = vrot.lane.b32.xlu0 %v202, 12
        %v459 = vpop.permute.xlu0 %458
        %460 = vrot.lane.b32.xlu0 %v204, 12
        %v461 = vpop.permute.xlu0 %460
        %462 = vrot.lane.b32.xlu0 %v205, 12
        %v463 = vpop.permute.xlu0 %462
        %464 = vrot.lane.b32.xlu0 %v207, 12
        %v465 = vpop.permute.xlu0 %464
        %466 = vrot.lane.b32.xlu0 %v208, 12
        %v467 = vpop.permute.xlu0 %466
        %468 = vrot.lane.b32.xlu0 %v210, 12
        %v469 = vpop.permute.xlu0 %468
        %470 = vrot.lane.b32.xlu0 %v211, 12
        %v471 = vpop.permute.xlu0 %470
        %472 = vrot.lane.b32.xlu0 %v213, 12
        %v473 = vpop.permute.xlu0 %472
        %474 = vrot.lane.b32.xlu0 %v214, 12
        %v475 = vpop.permute.xlu0 %474
        %476 = vrot.lane.b32.xlu0 %v216, 12
        %v477 = vpop.permute.xlu0 %476
        %478 = vrot.lane.b32.xlu0 %v217, 12
        %v479 = vpop.permute.xlu0 %478
        %480 = vrot.lane.b32.xlu0 %v219, 12
        %v481 = vpop.permute.xlu0 %480
        %482 = vrot.lane.b32.xlu0 %v220, 12
        %v483 = vpop.permute.xlu0 %482
        %484 = vrot.lane.b32.xlu0 %v222, 12
        %v485 = vpop.permute.xlu0 %484
        %486 = vrot.lane.b32.xlu0 %v223, 12
        %v487 = vpop.permute.xlu0 %486
        %504 = vrot.lane.b32.xlu0 %v260, 16
        %v505 = vpop.permute.xlu0 %504
        %506 = vrot.lane.b32.xlu0 %v262, 16
        %v507 = vpop.permute.xlu0 %506
        %508 = vrot.lane.b32.xlu0 %v265, 16
        %v509 = vpop.permute.xlu0 %508
        %510 = vrot.lane.b32.xlu0 %v267, 16
        %v511 = vpop.permute.xlu0 %510
        %512 = vrot.lane.b32.xlu0 %v270, 16
        %v513 = vpop.permute.xlu0 %512
        %514 = vrot.lane.b32.xlu0 %v272, 16
        %v515 = vpop.permute.xlu0 %514
        %516 = vrot.lane.b32.xlu0 %v275, 16
        %v517 = vpop.permute.xlu0 %516
        %518 = vrot.lane.b32.xlu0 %v277, 16
        %v519 = vpop.permute.xlu0 %518
        %520 = vrot.lane.b32.xlu0 %v280, 16
        %v521 = vpop.permute.xlu0 %520
        %522 = vrot.lane.b32.xlu0 %v282, 16
        %v523 = vpop.permute.xlu0 %522
        %524 = vrot.lane.b32.xlu0 %v285, 16
        %v525 = vpop.permute.xlu0 %524
        %526 = vrot.lane.b32.xlu0 %v287, 16
        %v527 = vpop.permute.xlu0 %526
        %528 = vrot.lane.b32.xlu0 %v290, 16
        %v529 = vpop.permute.xlu0 %528
        %530 = vrot.lane.b32.xlu0 %v292, 16
        %v531 = vpop.permute.xlu0 %530
        %532 = vrot.lane.b32.xlu0 %v339, 16
        %v533 = vpop.permute.xlu0 %532
        %534 = vrot.lane.b32.xlu0 %v341, 16
        %v535 = vpop.permute.xlu0 %534
        %552 = vrot.lane.b32.xlu0 %v301, 20
        %v553 = vpop.permute.xlu0 %552
        %554 = vrot.lane.b32.xlu0 %v303, 20
        %v555 = vpop.permute.xlu0 %554
        %556 = vrot.lane.b32.xlu0 %v306, 20
        %v557 = vpop.permute.xlu0 %556
        %558 = vrot.lane.b32.xlu0 %v308, 20
        %v559 = vpop.permute.xlu0 %558
        %560 = vrot.lane.b32.xlu0 %v311, 20
        %v561 = vpop.permute.xlu0 %560
        %562 = vrot.lane.b32.xlu0 %v313, 20
        %v563 = vpop.permute.xlu0 %562
        %564 = vrot.lane.b32.xlu0 %v316, 20
        %v565 = vpop.permute.xlu0 %564
        %566 = vrot.lane.b32.xlu0 %v318, 20
        %v567 = vpop.permute.xlu0 %566
        %568 = vrot.lane.b32.xlu0 %v321, 20
        %v569 = vpop.permute.xlu0 %568
        %570 = vrot.lane.b32.xlu0 %v323, 20
        %v571 = vpop.permute.xlu0 %570
        %572 = vrot.lane.b32.xlu0 %v326, 20
        %v573 = vpop.permute.xlu0 %572
        %574 = vrot.lane.b32.xlu0 %v328, 20
        %v575 = vpop.permute.xlu0 %574
        %576 = vrot.lane.b32.xlu0 %v331, 20
        %v577 = vpop.permute.xlu0 %576
        %578 = vrot.lane.b32.xlu0 %v333, 20
        %v579 = vpop.permute.xlu0 %578
        %580 = vrot.lane.b32.xlu0 %v344, 20
        %v581 = vpop.permute.xlu0 %580
        %582 = vrot.lane.b32.xlu0 %v346, 20
        %v583 = vpop.permute.xlu0 %582
        %600 = vrot.lane.b32.xlu0 %v204, 24
        %v601 = vpop.permute.xlu0 %600
        %602 = vrot.lane.b32.xlu0 %v205, 24
        %v603 = vpop.permute.xlu0 %602
        %604 = vrot.lane.b32.xlu0 %v207, 24
        %v605 = vpop.permute.xlu0 %604
        %606 = vrot.lane.b32.xlu0 %v208, 24
        %v607 = vpop.permute.xlu0 %606
        %608 = vrot.lane.b32.xlu0 %v210, 24
        %v609 = vpop.permute.xlu0 %608
        %610 = vrot.lane.b32.xlu0 %v211, 24
        %v611 = vpop.permute.xlu0 %610
        %612 = vrot.lane.b32.xlu0 %v213, 24
        %v613 = vpop.permute.xlu0 %612
        %614 = vrot.lane.b32.xlu0 %v214, 24
        %v615 = vpop.permute.xlu0 %614
        %616 = vrot.lane.b32.xlu0 %v216, 24
        %v617 = vpop.permute.xlu0 %616
        %618 = vrot.lane.b32.xlu0 %v217, 24
        %v619 = vpop.permute.xlu0 %618
        %620 = vrot.lane.b32.xlu0 %v219, 24
        %v621 = vpop.permute.xlu0 %620
        %622 = vrot.lane.b32.xlu0 %v220, 24
        %v623 = vpop.permute.xlu0 %622
        %624 = vrot.lane.b32.xlu0 %v222, 24
        %v625 = vpop.permute.xlu0 %624
        %626 = vrot.lane.b32.xlu0 %v223, 24
        %v627 = vpop.permute.xlu0 %626
        %628 = vrot.lane.b32.xlu0 %v225, 24
        %v629 = vpop.permute.xlu0 %628
        %630 = vrot.lane.b32.xlu0 %v226, 24
        %v631 = vpop.permute.xlu0 %630
        %648 = vrot.lane.b32.xlu0 %v265, 28
        %v649 = vpop.permute.xlu0 %648
        %650 = vrot.lane.b32.xlu0 %v267, 28
        %v651 = vpop.permute.xlu0 %650
        %652 = vrot.lane.b32.xlu0 %v270, 28
        %v653 = vpop.permute.xlu0 %652
        %654 = vrot.lane.b32.xlu0 %v272, 28
        %v655 = vpop.permute.xlu0 %654
        %656 = vrot.lane.b32.xlu0 %v275, 28
        %v657 = vpop.permute.xlu0 %656
        %658 = vrot.lane.b32.xlu0 %v277, 28
        %v659 = vpop.permute.xlu0 %658
        %660 = vrot.lane.b32.xlu0 %v280, 28
        %v661 = vpop.permute.xlu0 %660
        %662 = vrot.lane.b32.xlu0 %v282, 28
        %v663 = vpop.permute.xlu0 %662
        %664 = vrot.lane.b32.xlu0 %v285, 28
        %v665 = vpop.permute.xlu0 %664
        %666 = vrot.lane.b32.xlu0 %v287, 28
        %v667 = vpop.permute.xlu0 %666
        %668 = vrot.lane.b32.xlu0 %v290, 28
        %v669 = vpop.permute.xlu0 %668
        %670 = vrot.lane.b32.xlu0 %v292, 28
        %v671 = vpop.permute.xlu0 %670
        %672 = vrot.lane.b32.xlu0 %v339, 28
        %v673 = vpop.permute.xlu0 %672
        %674 = vrot.lane.b32.xlu0 %v341, 28
        %v675 = vpop.permute.xlu0 %674
        %676 = vrot.lane.b32.xlu0 %v352, 28
        %v677 = vpop.permute.xlu0 %676
        %678 = vrot.lane.b32.xlu0 %v354, 28
        %v679 = vpop.permute.xlu0 %678
        %696 = vrot.lane.b32.xlu0 %v306, 32
        %v697 = vpop.permute.xlu0 %696
        %698 = vrot.lane.b32.xlu0 %v308, 32
        %v699 = vpop.permute.xlu0 %698
        %700 = vrot.lane.b32.xlu0 %v311, 32
        %v701 = vpop.permute.xlu0 %700
        %702 = vrot.lane.b32.xlu0 %v313, 32
        %v703 = vpop.permute.xlu0 %702
        %704 = vrot.lane.b32.xlu0 %v316, 32
        %v705 = vpop.permute.xlu0 %704
        %706 = vrot.lane.b32.xlu0 %v318, 32
        %v707 = vpop.permute.xlu0 %706
        %708 = vrot.lane.b32.xlu0 %v321, 32
        %v709 = vpop.permute.xlu0 %708
        %710 = vrot.lane.b32.xlu0 %v323, 32
        %v711 = vpop.permute.xlu0 %710
        %712 = vrot.lane.b32.xlu0 %v326, 32
        %v713 = vpop.permute.xlu0 %712
        %714 = vrot.lane.b32.xlu0 %v328, 32
        %v715 = vpop.permute.xlu0 %714
        %716 = vrot.lane.b32.xlu0 %v331, 32
        %v717 = vpop.permute.xlu0 %716
        %718 = vrot.lane.b32.xlu0 %v333, 32
        %v719 = vpop.permute.xlu0 %718
        %720 = vrot.lane.b32.xlu0 %v344, 32
        %v721 = vpop.permute.xlu0 %720
        %722 = vrot.lane.b32.xlu0 %v346, 32
        %v723 = vpop.permute.xlu0 %722
        %724 = vrot.lane.b32.xlu0 %v357, 32
        %v725 = vpop.permute.xlu0 %724
        %726 = vrot.lane.b32.xlu0 %v359, 32
        %v727 = vpop.permute.xlu0 %726
        %vm744 = vcmask 31744
        %v745 = vsel %vm744, %v198, %v361
        %v746 = vsel %vm744, %v199, %v363
        %v747 = vsel %vm744, %v201, %v365
        %v748 = vsel %vm744, %v202, %v367
        %v749 = vsel %vm744, %v204, %v369
        %v750 = vsel %vm744, %v205, %v371
        %v751 = vsel %vm744, %v207, %v373
        %v752 = vsel %vm744, %v208, %v375
        %v753 = vsel %vm744, %v210, %v377
        %v754 = vsel %vm744, %v211, %v379
        %v755 = vsel %vm744, %v213, %v381
        %v756 = vsel %vm744, %v214, %v383
        %v757 = vsel %vm744, %v216, %v385
        %v758 = vsel %vm744, %v217, %v387
        %v759 = vsel %vm744, %v219, %v389
        %v760 = vsel %vm744, %v220, %v391
        %vm761 = vcmask 64512
        %v762 = vsel %vm761, %v745, %v409
        %v763 = vsel %vm761, %v746, %v411
        %v764 = vsel %vm761, %v747, %v413
        %v765 = vsel %vm761, %v748, %v415
        %v766 = vsel %vm761, %v749, %v417
        %v767 = vsel %vm761, %v750, %v419
        %v768 = vsel %vm761, %v751, %v421
        %v769 = vsel %vm761, %v752, %v423
        %v770 = vsel %vm761, %v753, %v425
        %v771 = vsel %vm761, %v754, %v427
        %v772 = vsel %vm761, %v755, %v429
        %v773 = vsel %vm761, %v756, %v431
        %v774 = vsel %vm761, %v757, %v433
        %v775 = vsel %vm761, %v758, %v435
        %v776 = vsel %vm761, %v759, %v437
        %v777 = vsel %vm761, %v760, %v439
        %vm778 = vcmask 97280
        %v779 = vsel %vm778, %v762, %v457
        %v780 = vsel %vm778, %v763, %v459
        %v781 = vsel %vm778, %v764, %v461
        %v782 = vsel %vm778, %v765, %v463
        %v783 = vsel %vm778, %v766, %v465
        %v784 = vsel %vm778, %v767, %v467
        %v785 = vsel %vm778, %v768, %v469
        %v786 = vsel %vm778, %v769, %v471
        %v787 = vsel %vm778, %v770, %v473
        %v788 = vsel %vm778, %v771, %v475
        %v789 = vsel %vm778, %v772, %v477
        %v790 = vsel %vm778, %v773, %v479
        %v791 = vsel %vm778, %v774, %v481
        %v792 = vsel %vm778, %v775, %v483
        %v793 = vsel %vm778, %v776, %v485
        %v794 = vsel %vm778, %v777, %v487
        %vm795 = vcmask 130048
        %v796 = vsel %vm795, %v779, %v505
        %v797 = vsel %vm795, %v780, %v507
        %v798 = vsel %vm795, %v781, %v509
        %v799 = vsel %vm795, %v782, %v511
        %v800 = vsel %vm795, %v783, %v513
        %v801 = vsel %vm795, %v784, %v515
        %v802 = vsel %vm795, %v785, %v517
        %v803 = vsel %vm795, %v786, %v519
        %v804 = vsel %vm795, %v787, %v521
        %v805 = vsel %vm795, %v788, %v523
        %v806 = vsel %vm795, %v789, %v525
        %v807 = vsel %vm795, %v790, %v527
        %v808 = vsel %vm795, %v791, %v529
        %v809 = vsel %vm795, %v792, %v531
        %v810 = vsel %vm795, %v793, %v533
        %v811 = vsel %vm795, %v794, %v535
        %vm812 = vcmask 162816
        %v813 = vsel %vm812, %v796, %v553
        %v814 = vsel %vm812, %v797, %v555
        %v815 = vsel %vm812, %v798, %v557
        %v816 = vsel %vm812, %v799, %v559
        %v817 = vsel %vm812, %v800, %v561
        %v818 = vsel %vm812, %v801, %v563
        %v819 = vsel %vm812, %v802, %v565
        %v820 = vsel %vm812, %v803, %v567
        %v821 = vsel %vm812, %v804, %v569
        %v822 = vsel %vm812, %v805, %v571
        %v823 = vsel %vm812, %v806, %v573
        %v824 = vsel %vm812, %v807, %v575
        %v825 = vsel %vm812, %v808, %v577
        %v826 = vsel %vm812, %v809, %v579
        %v827 = vsel %vm812, %v810, %v581
        %v828 = vsel %vm812, %v811, %v583
        %vm829 = vcmask 195584
        %v830 = vsel %vm829, %v813, %v601
        %v831 = vsel %vm829, %v814, %v603
        %v832 = vsel %vm829, %v815, %v605
        %v833 = vsel %vm829, %v816, %v607
        %v834 = vsel %vm829, %v817, %v609
        %v835 = vsel %vm829, %v818, %v611
        %v836 = vsel %vm829, %v819, %v613
        %v837 = vsel %vm829, %v820, %v615
        %v838 = vsel %vm829, %v821, %v617
        %v839 = vsel %vm829, %v822, %v619
        %v840 = vsel %vm829, %v823, %v621
        %v841 = vsel %vm829, %v824, %v623
        %v842 = vsel %vm829, %v825, %v625
        %v843 = vsel %vm829, %v826, %v627
        %v844 = vsel %vm829, %v827, %v629
        %v845 = vsel %vm829, %v828, %v631
        %vm846 = vcmask 228352
        %v847 = vsel %vm846, %v830, %v649
        %v848 = vsel %vm846, %v831, %v651
        %v849 = vsel %vm846, %v832, %v653
        %v850 = vsel %vm846, %v833, %v655
        %v851 = vsel %vm846, %v834, %v657
        %v852 = vsel %vm846, %v835, %v659
        %v853 = vsel %vm846, %v836, %v661
        %v854 = vsel %vm846, %v837, %v663
        %v855 = vsel %vm846, %v838, %v665
        %v856 = vsel %vm846, %v839, %v667
        %v857 = vsel %vm846, %v840, %v669
        %v858 = vsel %vm846, %v841, %v671
        %v859 = vsel %vm846, %v842, %v673
        %v860 = vsel %vm846, %v843, %v675
        %v861 = vsel %vm846, %v844, %v677
        %v862 = vsel %vm846, %v845, %v679
        %vm863 = vcmask 261120
        %v864 = vsel %vm863, %v847, %v697
        %v865 = vsel %vm863, %v848, %v699
        %v866 = vsel %vm863, %v849, %v701
        %v867 = vsel %vm863, %v850, %v703
        %v868 = vsel %vm863, %v851, %v705
        %v869 = vsel %vm863, %v852, %v707
        %v870 = vsel %vm863, %v853, %v709
        %v871 = vsel %vm863, %v854, %v711
        %v872 = vsel %vm863, %v855, %v713
        %v873 = vsel %vm863, %v856, %v715
        %v874 = vsel %vm863, %v857, %v717
        %v875 = vsel %vm863, %v858, %v719
        %v876 = vsel %vm863, %v859, %v721
        %v877 = vsel %vm863, %v860, %v723
        %v878 = vsel %vm863, %v861, %v725
        %v879 = vsel %vm863, %v862, %v727
        %v880 = vpack.c.bf16 %v865, %v864
        %v881 = vpack.c.bf16 %v867, %v866
        %v882 = vpack.c.bf16 %v869, %v868
        %v883 = vpack.c.bf16 %v871, %v870
        %v884 = vpack.c.bf16 %v873, %v872
        %v885 = vpack.c.bf16 %v875, %v874
        %v886 = vpack.c.bf16 %v877, %v876
        %v887 = vpack.c.bf16 %v879, %v878
        %v888 = vld [vmem:[%s1] sm:$0xf]
        %v889 = vld [vmem:[%s1 + $0x4] sm:$0xf]
        %v890 = vld [vmem:[%s1 + $0x8] sm:$0xf]
        %v891 = vld [vmem:[%s1 + $0xc] sm:$0xf]
        %v892 = vld [vmem:[%s1 + $0x10] sm:$0x3]
        %v893 = vld [vmem:[%s2] sm:$0x1]
        %v895 = vlaneseq
        %v896 = vshrl.u32 %v895, 7
        %v897 = vsub.s32 0, %v896
        %v898 = vrot.slane %v893, %v897
        %v905 = vunpack.c.l.b16 %v888
        %v906 = vunpack.c.l.b16 %v889
        %v907 = vunpack.c.l.b16 %v890
        %v908 = vunpack.c.l.b16 %v891
        %v909 = vunpack.c.l.b16 %v892
        %v910 = vpack.c.b16 %v906, %v905
        %v911 = vpack.c.b16 %v908, %v907
        %v912 = vpack.c.b16 %v909, %v909
        %vm915 = vcmask 293888
        %v917 = vsel %vm915, %v880, 0
        %v920 = vsel %vm915, %v881, 0
        %v923 = vsel %vm915, %v882, 0
        %v926 = vsel %vm915, %v883, 0
        %v929 = vsel %vm915, %v884, 0
        %v932 = vsel %vm915, %v885, 0
        %v935 = vsel %vm915, %v886, 0
        %v938 = vsel %vm915, %v887, 0
        %vm940 = vcmask 1041408
        %v942 = vsel %vm940, %v912, 0
        %944 = vmatprep.subr.bf16.mxu0 0
        %945 = vmatpush1.bf16.msra.mxu0 0
        %946 = vmatprep.subr.bf16.mxu0 0
        %947 = vmatpush1.bf16.msra.mxu0 0
        %948 = vmatprep.subr.bf16.mxu0 0
        %949 = vmatpush1.bf16.msra.mxu0 0
        %950 = vmatprep.subr.bf16.mxu0 0
        %951 = vmatpush1.bf16.msra.mxu0 0
        %952 = vmatprep.subr.bf16.mxu0 0
        %953 = vmatpush1.bf16.msra.mxu0 0
        %954 = vmatprep.subr.bf16.mxu0 0
        %955 = vmatpush1.bf16.msra.mxu0 %v942
        %956 = vmatprep.subr.bf16.mxu0 0
        %957 = vmatpush1.bf16.msra.mxu0 %v911
        %958 = vmatprep.subr.bf16.mxu0 0
        %959 = vmatpush1.bf16.msra.mxu0 %v910
        %960 = vmatprep.subr.bf16.mxu0 0
        %961 = vmatpush2.bf16.msra.mxu0 0
        %962 = vmatprep.subr.bf16.mxu0 0
        %963 = vmatpush2.bf16.msra.mxu0 0
        %964 = vmatprep.subr.bf16.mxu0 0
        %965 = vmatpush2.bf16.msra.mxu0 0
        %966 = vmatprep.subr.bf16.mxu0 0
        %967 = vmatpush2.bf16.msra.mxu0 0
        %968 = vmatprep.subr.bf16.mxu0 0
        %969 = vmatpush2.bf16.msra.mxu0 0
        %970 = vmatprep.subr.bf16.mxu0 0
        %971 = vmatpush2.bf16.msra.mxu0 0
        %972 = vmatprep.subr.bf16.mxu0 0
        %973 = vmatpush2.bf16.msra.mxu0 0
        %974 = vmatprep.subr.bf16.mxu0 0
        %975 = vmatpush2.bf16.msra.mxu0 0
        %976 = vmatprep.mubr.bf16.mxu0 0
        %977 = vmatmul.mubr.bf16.gmra.mxu0 %v917
        %v978 = vpop.f32.mrf.mxu0
        %v979 = vadd.f32 %v898, %v978
        %v980 = vpop.f32.mrf.mxu0
        %v981 = vpop.f32.mrf.mxu0
        %v982 = vadd.f32 %v898, %v981
        %v983 = vpop.f32.mrf.mxu0
        %984 = vmatprep.mubr.bf16.mxu0 0
        %985 = vmatmul.mubr.bf16.gmra.mxu0 %v920
        %v986 = vpop.f32.mrf.mxu0
        %v987 = vadd.f32 %v898, %v986
        %v988 = vpop.f32.mrf.mxu0
        %v989 = vpop.f32.mrf.mxu0
        %v990 = vadd.f32 %v898, %v989
        %v991 = vpop.f32.mrf.mxu0
        %992 = vmatprep.mubr.bf16.mxu0 0
        %993 = vmatmul.mubr.bf16.gmra.mxu0 %v923
        %v994 = vpop.f32.mrf.mxu0
        %v995 = vadd.f32 %v898, %v994
        %v996 = vpop.f32.mrf.mxu0
        %v997 = vpop.f32.mrf.mxu0
        %v998 = vadd.f32 %v898, %v997
        %v999 = vpop.f32.mrf.mxu0
        %1000 = vmatprep.mubr.bf16.mxu0 0
        %1001 = vmatmul.mubr.bf16.gmra.mxu0 %v926
        %v1002 = vpop.f32.mrf.mxu0
        %v1003 = vadd.f32 %v898, %v1002
        %v1004 = vpop.f32.mrf.mxu0
        %v1005 = vpop.f32.mrf.mxu0
        %v1006 = vadd.f32 %v898, %v1005
        %v1007 = vpop.f32.mrf.mxu0
        %1008 = vmatprep.mubr.bf16.mxu0 0
        %1009 = vmatmul.mubr.bf16.gmra.mxu0 %v929
        %v1010 = vpop.f32.mrf.mxu0
        %v1011 = vadd.f32 %v898, %v1010
        %v1012 = vpop.f32.mrf.mxu0
        %v1013 = vpop.f32.mrf.mxu0
        %v1014 = vadd.f32 %v898, %v1013
        %v1015 = vpop.f32.mrf.mxu0
        %1016 = vmatprep.mubr.bf16.mxu0 0
        %1017 = vmatmul.mubr.bf16.gmra.mxu0 %v932
        %v1018 = vpop.f32.mrf.mxu0
        %v1019 = vadd.f32 %v898, %v1018
        %v1020 = vpop.f32.mrf.mxu0
        %v1021 = vpop.f32.mrf.mxu0
        %v1022 = vadd.f32 %v898, %v1021
        %v1023 = vpop.f32.mrf.mxu0
        %1024 = vmatprep.mubr.bf16.mxu0 0
        %1025 = vmatmul.mubr.bf16.gmra.mxu0 %v935
        %v1026 = vpop.f32.mrf.mxu0
        %v1027 = vadd.f32 %v898, %v1026
        %v1028 = vpop.f32.mrf.mxu0
        %v1029 = vpop.f32.mrf.mxu0
        %v1030 = vadd.f32 %v898, %v1029
        %v1031 = vpop.f32.mrf.mxu0
        %1032 = vmatprep.mubr.bf16.mxu0 0
        %1033 = vmatmul.mubr.bf16.gmra.mxu0 %v938
        %v1034 = vpop.f32.mrf.mxu0
        %v1035 = vadd.f32 %v898, %v1034
        %v1036 = vpop.f32.mrf.mxu0
        %v1037 = vpop.f32.mrf.mxu0
        %v1038 = vadd.f32 %v898, %v1037
        %v1039 = vpop.f32.mrf.mxu0
        %1040 = vdwg.mxu0
        %v1041 = vsub.f32 0.0, %v979
        %v1042 = vsub.f32 0.0, %v982
        %v1043 = vsub.f32 0.0, %v987
        %v1044 = vsub.f32 0.0, %v990
        %v1045 = vsub.f32 0.0, %v995
        %v1046 = vsub.f32 0.0, %v998
        %v1047 = vsub.f32 0.0, %v1003
        %v1048 = vsub.f32 0.0, %v1006
        %v1049 = vsub.f32 0.0, %v1011
        %v1050 = vsub.f32 0.0, %v1014
        %v1051 = vsub.f32 0.0, %v1019
        %v1052 = vsub.f32 0.0, %v1022
        %v1053 = vsub.f32 0.0, %v1027
        %v1054 = vsub.f32 0.0, %v1030
        %v1055 = vsub.f32 0.0, %v1035
        %v1056 = vsub.f32 0.0, %v1038
        %v1057 = vmul.f32 %v1041, 1.442695
        %v1058 = vpow.pop %v1057
        %v1059 = vmul.f32 %v1042, 1.442695
        %v1060 = vpow.pop %v1059
        %v1061 = vmul.f32 %v1043, 1.442695
        %v1062 = vpow.pop %v1061
        %v1063 = vmul.f32 %v1044, 1.442695
        %v1064 = vpow.pop %v1063
        %v1065 = vmul.f32 %v1045, 1.442695
        %v1066 = vpow.pop %v1065
        %v1067 = vmul.f32 %v1046, 1.442695
        %v1068 = vpow.pop %v1067
        %v1069 = vmul.f32 %v1047, 1.442695
        %v1070 = vpow.pop %v1069
        %v1071 = vmul.f32 %v1048, 1.442695
        %v1072 = vpow.pop %v1071
        %v1073 = vmul.f32 %v1049, 1.442695
        %v1074 = vpow.pop %v1073
        %v1075 = vmul.f32 %v1050, 1.442695
        %v1076 = vpow.pop %v1075
        %v1077 = vmul.f32 %v1051, 1.442695
        %v1078 = vpow.pop %v1077
        %v1079 = vmul.f32 %v1052, 1.442695
        %v1080 = vpow.pop %v1079
        %v1081 = vmul.f32 %v1053, 1.442695
        %v1082 = vpow.pop %v1081
        %v1083 = vmul.f32 %v1054, 1.442695
        %v1084 = vpow.pop %v1083
        %v1085 = vmul.f32 %v1055, 1.442695
        %v1086 = vpow.pop %v1085
        %v1087 = vmul.f32 %v1056, 1.442695
        %v1088 = vpow.pop %v1087
        %v1089 = vadd.f32 %v1058, 1.0
        %v1090 = vadd.f32 %v1060, 1.0
        %v1091 = vadd.f32 %v1062, 1.0
        %v1092 = vadd.f32 %v1064, 1.0
        %v1093 = vadd.f32 %v1066, 1.0
        %v1094 = vadd.f32 %v1068, 1.0
        %v1095 = vadd.f32 %v1070, 1.0
        %v1096 = vadd.f32 %v1072, 1.0
        %v1097 = vadd.f32 %v1074, 1.0
        %v1098 = vadd.f32 %v1076, 1.0
        %v1099 = vadd.f32 %v1078, 1.0
        %v1100 = vadd.f32 %v1080, 1.0
        %v1101 = vadd.f32 %v1082, 1.0
        %v1102 = vadd.f32 %v1084, 1.0
        %v1103 = vadd.f32 %v1086, 1.0
        %v1104 = vadd.f32 %v1088, 1.0
        %v1105 = vrcp.pop %v1089
        %v1106 = vmul.f32 %v979, %v1105
        %v1107 = vrcp.pop %v1090
        %v1108 = vmul.f32 %v982, %v1107
        %v1109 = vrcp.pop %v1091
        %v1110 = vmul.f32 %v987, %v1109
        %v1111 = vrcp.pop %v1092
        %v1112 = vmul.f32 %v990, %v1111
        %v1113 = vrcp.pop %v1093
        %v1114 = vmul.f32 %v995, %v1113
        %v1115 = vrcp.pop %v1094
        %v1116 = vmul.f32 %v998, %v1115
        %v1117 = vrcp.pop %v1095
        %v1118 = vmul.f32 %v1003, %v1117
        %v1119 = vrcp.pop %v1096
        %v1120 = vmul.f32 %v1006, %v1119
        %v1121 = vrcp.pop %v1097
        %v1122 = vmul.f32 %v1011, %v1121
        %v1123 = vrcp.pop %v1098
        %v1124 = vmul.f32 %v1014, %v1123
        %v1125 = vrcp.pop %v1099
        %v1126 = vmul.f32 %v1019, %v1125
        %v1127 = vrcp.pop %v1100
        %v1128 = vmul.f32 %v1022, %v1127
        %v1129 = vrcp.pop %v1101
        %v1130 = vmul.f32 %v1027, %v1129
        %v1131 = vrcp.pop %v1102
        %v1132 = vmul.f32 %v1030, %v1131
        %v1133 = vrcp.pop %v1103
        %v1134 = vmul.f32 %v1035, %v1133
        %v1135 = vrcp.pop %v1104
        %v1136 = vmul.f32 %v1038, %v1135
        %1137 = vst [vmem:[%s187] sm:$0xff] %v1106
        %1138 = vst [vmem:[%s187 + $0x8] sm:$0xff] %v1108
        %1139 = vst [vmem:[%s187 + $0x10] sm:$0xff] %v1110
        %1140 = vst [vmem:[%s187 + $0x18] sm:$0xff] %v1112
        %1141 = vst [vmem:[%s187 + $0x20] sm:$0xff] %v1114
        %1142 = vst [vmem:[%s187 + $0x28] sm:$0xff] %v1116
        %1143 = vst [vmem:[%s187 + $0x30] sm:$0xff] %v1118
        %1144 = vst [vmem:[%s187 + $0x38] sm:$0xff] %v1120
        %1145 = vst [vmem:[%s187 + $0x40] sm:$0xff] %v1122
        %1146 = vst [vmem:[%s187 + $0x48] sm:$0xff] %v1124
        %1147 = vst [vmem:[%s187 + $0x50] sm:$0xff] %v1126
        %1148 = vst [vmem:[%s187 + $0x58] sm:$0xff] %v1128
        %1149 = vst [vmem:[%s187 + $0x60] sm:$0xff] %v1130
        %1150 = vst [vmem:[%s187 + $0x68] sm:$0xff] %v1132
        %1151 = vst [vmem:[%s187 + $0x70] sm:$0xff] %v1134
        %1152 = vst [vmem:[%s187 + $0x78] sm:$0xff] %v1136
        %s1153 = sand.u32 %s109, 1
        %s1154 = scalar_lea.sflag [#allocation3], %s1153
        %s1155 = sand.u32 %s109, 1
        %s1156 = smul.addr %s1155, 128
        %s1157 = scalar_lea.vmem [#allocation2], %s1156
        // Predicated region
        $region33: #{tpu_custom_call.1} parent=31 // pred_check
          %p1158 = pneg %p119
        $region34: #{tpu_custom_call.1} parent=31 // pred_check_branch
          %1160 = sbr.rel (%p1158) target = $region36
        $region35: #{tpu_custom_call.1} parent=31 // pred_region
          %s1162 = ssub.s32 2048, 2048
          %1163 = vsyncadd %s1154, %s1162
          %s1164 = smul.addr %s22, 16
          %s1165 = smul.addr %s21, 32
          %s1166 = sadd.s32 %s1164, %s1165
          %s1167 = smul.addr %s1166, 128
          %s1168 = scalar_lea.hbm %s3, %s1167
          %s1169 = sshll.u32 %s1157, 4
          %s1170 = int_to_ptr.vmem [resolvable:$true] %s1169
          %1175 = dma.vmem_to_hbm [thread:$0]  %s1170, 2048, %s1168, %s1154, 128, 128, 8
        $region36: #{tpu_custom_call.1} parent=31 // pred_fallthru
          _
      $region32: #{tpu_custom_call.1} parent=5 // pred_fallthru
        _
      %p1176 = scmp.le.s32.totalorder 2, %s12
      // Predicated region
      $region37: #{tpu_custom_call.1} parent=5 // pred_check
        %p1177 = pneg %p1176
      $region38: #{tpu_custom_call.1} parent=5 // pred_check_branch
        %1179 = sbr.rel (%p1177) target = $region40
      $region39: #{tpu_custom_call.1} parent=5 // pred_region
        %s1180 = ssub.s32 %s12, 2
        // Predicated region
        $region41: #{tpu_custom_call.1} parent=39 // pred_check
          %p1181 = pneg %p125
        $region42: #{tpu_custom_call.1} parent=39 // pred_check_branch
          %1183 = sbr.rel (%p1181) target = $region44
        $region43: #{tpu_custom_call.1} parent=39 // pred_region
          %s1184 = sand.u32 %s110, 1
          %s1185 = scalar_lea.sflag [#allocation3], %s1184
          %s1186 = sand.u32 %s110, 1
          %s1187 = smul.addr %s1186, 128
          %s1188 = scalar_lea.vmem [#allocation2], %s1187
          %1189 = dma.done %s1185, 2048
        $region44: #{tpu_custom_call.1} parent=39 // pred_fallthru
          _
      $region40: #{tpu_custom_call.1} parent=5 // pred_fallthru
        _
    $region6: #{tpu_custom_call.1} parent=1 // loop_footer
      %s16 = sadd.s32 1, %s12
    $region7: #{tpu_custom_call.1} parent=1 // loop_footer_branch
      %11 = sbr.rel target = $region3
    $region8: #{tpu_custom_call.1} parent=1 // loop_exit
      _
    %1190 = vsyncpa [#allocation3], 1
    %s1191 = scalar_lea.sflag [#allocation3], 1
    %1192 = vsyncpa %s1191, 1

</llo_original>
